<compile_context>
chip_gen: v5e
topology: v5e:2x2
jax: 0.10.0
libtpu: 0.0.40
codegen_flags: <defaults>
</compile_context>

<pallas_src>
import jax
import jax.numpy as jnp
from jax import lax
from jax.experimental import pallas as pl
from jax.experimental.pallas import tpu as pltpu

_TM = 128     # batch tile (lane-dense rows / MXU M)
_TK_MAX = 256 # max contraction tile over the projection input dim
_LANE = 128


def _round_up(x, m):
    return (x + m - 1) // m * m


# --------------------------------------------------------------------------
# Kernel 1: linear projection + L2 normalize (+ optional scalar scale)
# grid = (batch_tiles, k_tiles); output block is resident across k (accumulator).
# --------------------------------------------------------------------------
def _encode_kernel(scale_ref, x_ref, w_ref, feat_ref, acc_ref):
    k = pl.program_id(1)

    @pl.when(k == 0)
    def _():
        acc_ref[...] = jnp.zeros_like(acc_ref)

    # bf16 x bf16 -> f32 accumulate on the MXU
    acc_ref[...] += jnp.dot(x_ref[...], w_ref[...],
                            preferred_element_type=jnp.float32)

    @pl.when(k == pl.num_programs(1) - 1)
    def _():
        acc = acc_ref[...]                                       # f32 [TM, E]
        # L2 normalize in f32 (EUP rsqrt). The tiny floor only affects all-zero
        # padded rows (they become 0 instead of NaN); real rows are unchanged.
        ssum = jnp.sum(acc * acc, axis=-1, keepdims=True)
        inv = lax.rsqrt(jnp.maximum(ssum, 1e-30))
        feat_ref[...] = (acc * inv * scale_ref[0, 0]).astype(feat_ref.dtype)


# --------------------------------------------------------------------------
# Kernel 2: scaled cosine-similarity logits, img_f @ txt_f^T without an
# explicit transpose (contract dim 1 of both operands directly on the MXU).
# --------------------------------------------------------------------------
def _similarity_kernel(img_ref, txt_ref, out_ref):
    out_ref[...] = lax.dot_general(
        img_ref[...], txt_ref[...],
        dimension_numbers=(((1,), (1,)), ((), ())),
        preferred_element_type=jnp.float32)


# --------------------------------------------------------------------------
# Wrappers
# --------------------------------------------------------------------------
def _encode(x, w, scale):
    """x: [B, D] f32, w: [D, E] f32, scale: [1,1] f32 -> [Bp, Ep] bf16 features."""
    B, D = x.shape
    E = w.shape[1]
    Bp = _round_up(B, _TM)
    Ep = _round_up(E, _LANE)
    # adaptive contraction tile: don't pad a small D up to the full K-tile.
    tk = min(_TK_MAX, _round_up(D, _LANE))
    Dp = _round_up(D, tk)

    # bf16 MXU inputs; zero padding is exact for the contraction / norm.
    x_p = jnp.pad(x.astype(jnp.bfloat16), ((0, Bp - B), (0, Dp - D)))
    w_p = jnp.pad(w.astype(jnp.bfloat16), ((0, Dp - D), (0, Ep - E)))

    grid = (Bp // _TM, Dp // tk)

    return pl.pallas_call(
        _encode_kernel,
        out_shape=jax.ShapeDtypeStruct((Bp, Ep), jnp.bfloat16),
        grid_spec=pltpu.PrefetchScalarGridSpec(
            num_scalar_prefetch=0,
            grid=grid,
            in_specs=[
                pl.BlockSpec(memory_space=pltpu.SMEM),            # scale scalar
                pl.BlockSpec((_TM, tk), lambda i, k: (i, k)),     # activations tile
                pl.BlockSpec((tk, Ep), lambda i, k: (k, 0)),      # weight tile
            ],
            out_specs=pl.BlockSpec((_TM, Ep), lambda i, k: (i, 0)),
            scratch_shapes=[pltpu.VMEM((_TM, Ep), jnp.float32)],
        ),
        compiler_params=pltpu.CompilerParams(
            dimension_semantics=("parallel", "arbitrary")),
    )(scale, x_p, w_p)


def _similarity(img_feat, txt_feat):
    """img_feat, txt_feat: [Bp, Ep] bf16 -> [Bp, Bp] f32 logits (lane-dense)."""
    Bp, Ep = img_feat.shape
    grid = (Bp // _TM, Bp // _TM)

    return pl.pallas_call(
        _similarity_kernel,
        out_shape=jax.ShapeDtypeStruct((Bp, Bp), jnp.float32),
        grid_spec=pltpu.PrefetchScalarGridSpec(
            num_scalar_prefetch=0,
            grid=grid,
            in_specs=[
                pl.BlockSpec((_TM, Ep), lambda i, j: (i, 0)),
                pl.BlockSpec((_TM, Ep), lambda i, j: (j, 0)),
            ],
            out_specs=pl.BlockSpec((_TM, _TM), lambda i, j: (i, j)),
        ),
        compiler_params=pltpu.CompilerParams(
            dimension_semantics=("parallel", "parallel")),
    )(img_feat, txt_feat)


def clip_forward(image_tensor, text_tensor, params):
    """Mirror of Model.forward.

    image_tensor: [B, C, H, W] float32 (NCHW)
    text_tensor : [B, T] int32 token ids
    returns (logits_per_image [B,B] f32, logits_per_text [B,B] f32, ground_truth [B])
    """
    B = image_tensor.shape[0]

    # ---- glue: flatten image (NCHW row-major), embed + mean-pool text ----
    img_flat = image_tensor.reshape(B, -1).astype(jnp.float32)           # [B, D_img]
    txt_emb = jnp.take(params["tok_embed"], text_tensor, axis=0)         # [B, T, D_txt]
    txt_pooled = jnp.mean(txt_emb, axis=1).astype(jnp.float32)           # [B, D_txt]

    # hoist exp(logit_scale); applied to image features inside the encode kernel
    scale = jnp.exp(params["logit_scale"]).astype(jnp.float32).reshape(1, 1)
    one = jnp.ones((1, 1), jnp.float32)

    img_feat = _encode(img_flat, params["w_img"], scale)   # [Bp, Ep] bf16, pre-scaled
    txt_feat = _encode(txt_pooled, params["w_txt"], one)   # [Bp, Ep] bf16

    logits_pad = _similarity(img_feat, txt_feat)            # [Bp, Bp] f32 (lane-dense)

    logits_per_image = logits_pad[:B, :B]
    logits_per_text = logits_per_image.T                    # cheap wrapper transpose
    ground_truth = jnp.arange(B, dtype=jnp.int32)
    return logits_per_image, logits_per_text, ground_truth


def init_params(key, d_img, d_txt, embed_dim, vocab_size):
    k1, k2, k3 = jax.random.split(key, 3)
    return {
        "w_img": jax.random.normal(k1, (d_img, embed_dim), jnp.float32) * 0.02,
        "w_txt": jax.random.normal(k2, (d_txt, embed_dim), jnp.float32) * 0.02,
        "tok_embed": jax.random.normal(k3, (vocab_size, d_txt), jnp.float32) * 0.02,
        # CLIP initializes logit_scale = log(1/0.07)
        "logit_scale": jnp.array([jnp.log(1.0 / 0.07)], jnp.float32),
    }


if __name__ == "__main__":
    key = jax.random.PRNGKey(0)
    kimg, ktxt, kpar = jax.random.split(key, 3)

    B, C, H, W = 8, 3, 16, 16        # small image: 3x16x16 -> d_img = 768
    T = 8                            # short text sequence
    D_TXT = 64
    EMBED = 128
    VOCAB = 128

    image_tensor = jax.random.normal(kimg, (B, C, H, W), jnp.float32)
    text_tensor = jax.random.randint(ktxt, (B, T), 0, VOCAB, jnp.int32)

    params = init_params(kpar, C * H * W, D_TXT, EMBED, VOCAB)

    lpi, lpt, gt = clip_forward(image_tensor, text_tensor, params)
    jax.block_until_ready((lpi, lpt, gt))

    # ---- pure-JAX reference mirroring the kernel's bf16 MXU precision ----
    def ref_encode(x, w, scale):
        y = jnp.dot(x.astype(jnp.bfloat16), w.astype(jnp.bfloat16),
                    preferred_element_type=jnp.float32)
        y = y * lax.rsqrt(jnp.sum(y * y, axis=-1, keepdims=True)) * scale
        return y.astype(jnp.bfloat16)

    img_flat = image_tensor.reshape(B, -1)
    txt_pooled = jnp.mean(jnp.take(params["tok_embed"], text_tensor, axis=0), axis=1)
    scale_ref = jnp.exp(params["logit_scale"][0])
    img_f = ref_encode(img_flat, params["w_img"], scale_ref)
    txt_f = ref_encode(txt_pooled, params["w_txt"], 1.0)
    ref = jnp.dot(img_f, txt_f.T, preferred_element_type=jnp.float32)

    assert lpi.shape == (B, B) and lpt.shape == (B, B)
    assert jnp.allclose(lpi, ref, atol=5e-2, rtol=5e-2), \
        f"logits_per_image mismatch: max err {jnp.max(jnp.abs(lpi - ref))}"
    assert jnp.allclose(lpt, ref.T, atol=5e-2, rtol=5e-2)
    assert jnp.array_equal(lpt, lpi.T)
    assert (gt == jnp.arange(B)).all()

    print("KERNEL_OK")
</pallas_src>

<mosaic_0001>
module attributes {stable_mosaic.version = 11 : i64} {
  func.func @_encode_kernel(%arg0: i32, %arg1: i32, %arg2: memref<1x1xf32, #tpu.memory_space<smem>>, %arg3: memref<128x256xbf16, #tpu.memory_space<vmem>>, %arg4: memref<256x128xbf16, #tpu.memory_space<vmem>>, %arg5: memref<128x128xbf16, #tpu.memory_space<vmem>>, %arg6: memref<128x128xf32, #tpu.memory_space<vmem>>) attributes {dimension_semantics = [#tpu.dimension_semantics<parallel>, #tpu.dimension_semantics<arbitrary>], iteration_bounds = array<i64: 1, 3>, scalar_prefetch = 0 : i64, scratch_operands = 1 : i64, tpu.core_type = #tpu.core_type<tc>, window_params = [{transform_indices = @transform_0, window_bounds = array<i64: 1, 1>}, {transform_indices = @transform_1, window_bounds = array<i64: 128, 256>}, {transform_indices = @transform_2, window_bounds = array<i64: 256, 128>}, {transform_indices = @transform_3, window_bounds = array<i64: 128, 128>}]} {
    %c0_i32 = arith.constant 0 : i32
    %0 = arith.cmpi eq, %arg1, %c0_i32 : i32
    %1 = arith.extui %0 : i1 to i32
    %c0_i32_0 = arith.constant 0 : i32
    %2 = arith.cmpi ne, %1, %c0_i32_0 : i32
    scf.if %2 {
      %cst_9 = arith.constant 0.000000e+00 : f32
      %12 = vector.broadcast %cst_9 : f32 to vector<128x128xf32>
      %c0_10 = arith.constant 0 : index
      %c0_11 = arith.constant 0 : index
      %13 = vector.load %arg6[%c0_10, %c0_11] : memref<128x128xf32, #tpu.memory_space<vmem>>, vector<128x128xf32>
      tpu.vector_store %arg6[%c0_10, %c0_11], %12 {strides = array<i32>} : memref<128x128xf32, #tpu.memory_space<vmem>>, vector<128x128xf32>,
    } else {
    }
    %c0 = arith.constant 0 : index
    %c0_1 = arith.constant 0 : index
    %3 = vector.load %arg6[%c0, %c0_1] : memref<128x128xf32, #tpu.memory_space<vmem>>, vector<128x128xf32>
    %c0_2 = arith.constant 0 : index
    %c0_3 = arith.constant 0 : index
    %4 = vector.load %arg3[%c0_2, %c0_3] : memref<128x256xbf16, #tpu.memory_space<vmem>>, vector<128x256xbf16>
    %c0_4 = arith.constant 0 : index
    %c0_5 = arith.constant 0 : index
    %5 = vector.load %arg4[%c0_4, %c0_5] : memref<256x128xbf16, #tpu.memory_space<vmem>>, vector<256x128xbf16>
    %cst = arith.constant dense<0.000000e+00> : vector<128x128xf32>
    %6 = tpu.matmul %4, %5, %cst {dimension_numbers = #tpu.dot_dimension_numbers<[1], [0], [0], [1], [0, 0, 1, 1], [], []>} : vector<128x256xbf16>, vector<256x128xbf16>, vector<128x128xf32> -> vector<128x128xf32>
    %7 = arith.addf %3, %6 : vector<128x128xf32>
    %c0_6 = arith.constant 0 : index
    %c0_7 = arith.constant 0 : index
    %8 = vector.load %arg6[%c0_6, %c0_7] : memref<128x128xf32, #tpu.memory_space<vmem>>, vector<128x128xf32>
    tpu.vector_store %arg6[%c0_6, %c0_7], %7 {strides = array<i32>} : memref<128x128xf32, #tpu.memory_space<vmem>>, vector<128x128xf32>,
    %c2_i32 = arith.constant 2 : i32
    %9 = arith.cmpi eq, %arg1, %c2_i32 : i32
    %10 = arith.extui %9 : i1 to i32
    %c0_i32_8 = arith.constant 0 : i32
    %11 = arith.cmpi ne, %10, %c0_i32_8 : i32
    scf.if %11 {
      %c0_9 = arith.constant 0 : index
      %c0_10 = arith.constant 0 : index
      %12 = vector.load %arg6[%c0_9, %c0_10] : memref<128x128xf32, #tpu.memory_space<vmem>>, vector<128x128xf32>
      %13 = arith.mulf %12, %12 : vector<128x128xf32>
      %cst_11 = arith.constant dense<0.000000e+00> : vector<128xf32>
      %14 = vector.multi_reduction <add>, %13, %cst_11 [1] : vector<128x128xf32> to vector<128xf32>
      %15 = vector.shape_cast %14 : vector<128xf32> to vector<128x1xf32>
      %cst_12 = arith.constant 1.000000e-30 : f32
      %16 = vector.broadcast %cst_12 : f32 to vector<128x1xf32>
      %17 = arith.maximumf %15, %16 : vector<128x1xf32>
      %18 = math.rsqrt %17 : vector<128x1xf32>
      %19 = vector.broadcast %18 : vector<128x1xf32> to vector<128x128xf32>
      %20 = arith.mulf %12, %19 : vector<128x128xf32>
      %c0_13 = arith.constant 0 : index
      %c0_14 = arith.constant 0 : index
      %21 = memref.load %arg2[%c0_13, %c0_14] : memref<1x1xf32, #tpu.memory_space<smem>>
      %22 = vector.broadcast %21 : f32 to vector<128x128xf32>
      %23 = arith.mulf %20, %22 : vector<128x128xf32>
      %24 = arith.truncf %23 : vector<128x128xf32> to vector<128x128xbf16>
      %c0_15 = arith.constant 0 : index
      %c0_16 = arith.constant 0 : index
      %25 = vector.load %arg5[%c0_15, %c0_16] : memref<128x128xbf16, #tpu.memory_space<vmem>>, vector<128x128xbf16>
      tpu.vector_store %arg5[%c0_15, %c0_16], %24 {strides = array<i32>} : memref<128x128xbf16, #tpu.memory_space<vmem>>, vector<128x128xbf16>,
    } else {
    }
    return
  }
  func.func @transform_0(%arg0: i32, %arg1: i32) -> (i32, i32) {
    %c0_i32 = arith.constant 0 : i32
    %c0_i32_0 = arith.constant 0 : i32
    %c0_i32_1 = arith.constant 0 : i32
    return %c0_i32, %c0_i32_0 : i32, i32
  }
  func.func @transform_1(%arg0: i32, %arg1: i32) -> (i32, i32) {
    %c0_i32 = arith.constant 0 : i32
    return %arg0, %arg1 : i32, i32
  }
  func.func @transform_2(%arg0: i32, %arg1: i32) -> (i32, i32) {
    %c0_i32 = arith.constant 0 : i32
    %c0_i32_0 = arith.constant 0 : i32
    return %arg1, %c0_i32 : i32, i32
  }
  func.func @transform_3(%arg0: i32, %arg1: i32) -> (i32, i32) {
    %c0_i32 = arith.constant 0 : i32
    %c0_i32_0 = arith.constant 0 : i32
    return %arg0, %c0_i32 : i32, i32
  }
}

</mosaic_0001>

<llo_original>
// kernel: tpu_custom_call.1
$region0: #{tpu_custom_call.1}
  #allocation0 [shape = 'u32[]', space=smem, size = 0x4, offset = 0x4, fixed_abs, tag = 'smem constant byte address 0x4 - core index']
  #allocation1 [shape = 'u32[72,128]{1,0:T(1,128)}', space=vmem, size = 0x9000, scoped, tag = 'internal scratch']
  #allocation2 [shape = 'f32[128,128]{1,0:T(8,128)}', space=vmem, size = 0x10000, scoped, tag = 'scratch operand']
  #allocation3 [shape = 'f32[1,1]{1,0:T(1,128)S(6)}', space=smem, size = 0x200, scoped, tag = 'scoped memory for tpu_custom_call.1']
  %s0 = inlined_call_operand.<no memory space> [shape: f32[1,1], index: 0, kind: input, shape index: {}]
  %s1 = inlined_call_operand.hbm [shape: bf16[128,768], index: 1, kind: input, shape index: {}]
  %s2 = inlined_call_operand.hbm [shape: bf16[768,128], index: 2, kind: input, shape index: {}]
  %s3 = inlined_call_operand.hbm [shape: bf16[128,128], index: 3, kind: output, shape index: {}]
  %s4 = sld [smem:[#allocation0]]
  $region61: #{tpu_custom_call.1} parent=0
    _
  %s6 = ssub.s32 1, %s4
  %s7 = scalar_select 0, %s6, %s4
  %8 = sst [smem:[#allocation3]] %s0
  $region1: #{tpu_custom_call.1} parent=0
    #allocation4 [shape = 'u8[131072]{0}', space=vmem, size = 0x20000, scoped, tag = 'input window, operand 1']
    #allocation5 [shape = 's32[2]{0}', space=sflag, size = 0x8, scoped, tag = 'scoped memory for tpu_custom_call.1']
    #allocation6 [shape = 's32[2]{0}', space=sflag, size = 0x8, scoped, tag = 'scoped memory for tpu_custom_call.1']
    #allocation7 [shape = 'u8[131072]{0}', space=vmem, size = 0x20000, scoped, tag = 'input window, operand 2']
    #allocation8 [shape = 's32[2]{0}', space=sflag, size = 0x8, scoped, tag = 'scoped memory for tpu_custom_call.1']
    #allocation9 [shape = 'u8[32768]{0}', space=vmem, size = 0x8000, scoped, tag = 'output window, operand 0, single buffered']
    %9 = vsyncpa [#allocation5], 0
    %s10 = scalar_lea.sflag [#allocation5], 1
    %11 = vsyncpa %s10, 0
    %12 = vsyncpa [#allocation8], 0
    %s13 = scalar_lea.sflag [#allocation8], 1
    %14 = vsyncpa %s13, 0
    %15 = vsyncpa [#allocation6], 0
    loop: start=0, step=1, limit=5
    $region2: #{tpu_custom_call.1} parent=1 // loop_pre_header
      _
    $region3: #{tpu_custom_call.1} parent=1 // loop_header
      %s17 = sphi 0, %s21
      %p18 = scmp.ge.s32.totalorder %s17, 5
      %s24 = sphi 0, %s36
      %s25 = sphi 0, %s32
      %s26 = sphi 0, %s24
      %s27 = sphi 0, %s25
      %s28 = sphi 0, %s26
      %s29 = sphi 0, %s27
      %s37 = sphi 0, %s37
      %s39 = sphi 0, %s37
      %s40 = sphi 0, %s39
      %s54 = sphi 0, %s40
      %s62 = sphi 0, %s64
      %s65 = sphi 0, %s62
      %s66 = sphi 0, %s65
      %s82 = sphi 0, %s66
      %s88 = sphi 0, %s90
      %s91 = sphi 0, %s88
      %s92 = sphi 0, %s91
      %s108 = sphi 0, %s92
      %s114 = sphi 0, %s116
      %s117 = sphi 0, %s114
      %s118 = sphi 0, %s117
      %s134 = sphi 0, %s118
    $region4: #{tpu_custom_call.1} parent=1 // loop_header_branch
      %20 = sbr.rel (%p18) target = $region8
    $region5: #{tpu_custom_call.1} parent=1 // loop_body
      %s22 = ssub.s32 %s17, 1
      %s23 = ssub.s32 %s17, 2
      %s30 = sadd.s32 1, %s25
      %p31 = scmp.ge.s32.totalorder %s30, 3
      %s32 = scalar_select %p31, 0, %s30
      %s33 = sadd.s32 1, %s24
      %s34 = scalar_select %p31, %s33, %s24
      %p35 = scmp.ge.s32.totalorder %s34, 1
      %s36 = scalar_select %p35, 0, %s34
      %s38 = sadd.s32 %s37, 1
      %p41 = scmp.eq.s32.totalorder %s17, 2
      %p42 = scmp.ne.s32.totalorder %s37, %s39
      %p43 = scmp.eq.s32.totalorder %s17, 0
      %p44 = por %p42, %p43
      %p45 = scmp.ne.s32.totalorder %s37, %s39
      %p46 = scmp.eq.s32.totalorder %s22, 2
      %p47 = por %p45, %p46
      %p48 = scmp.ne.s32.totalorder %s39, %s40
      %p49 = scmp.eq.s32.totalorder %s22, 0
      %p50 = por %p48, %p49
      %p51 = scmp.ne.s32.totalorder %s39, %s40
      %p52 = scmp.eq.s32.totalorder %s23, 2
      %p53 = por %p51, %p52
      %p55 = scmp.ne.s32.totalorder %s40, %s54
      %p56 = scmp.eq.s32.totalorder %s23, 0
      %p57 = por %p55, %p56
      %s58 = ssub.s32 %s24, %s36
      %s59 = ssub.s32 %s25, %s32
      %s60 = sor.u32 %s58, %s59
      %p61 = scmp.eq.s32.totalorder %s60, 0
      %s63 = sadd.s32 %s62, 1
      %s64 = scalar_select %p61, %s62, %s63
      %p67 = pneg %p61
      %p68 = scmp.eq.s32.totalorder %s17, 2
      %p69 = por %p67, %p68
      %p70 = scmp.ne.s32.totalorder %s62, %s65
      %p71 = scmp.eq.s32.totalorder %s17, 0
      %p72 = por %p70, %p71
      %p73 = scmp.ne.s32.totalorder %s62, %s65
      %p74 = scmp.eq.s32.totalorder %s22, 2
      %p75 = por %p73, %p74
      %p76 = scmp.ne.s32.totalorder %s65, %s66
      %p77 = scmp.eq.s32.totalorder %s22, 0
      %p78 = por %p76, %p77
      %p79 = scmp.ne.s32.totalorder %s65, %s66
      %p80 = scmp.eq.s32.totalorder %s23, 2
      %p81 = por %p79, %p80
      %p83 = scmp.ne.s32.totalorder %s66, %s82
      %p84 = scmp.eq.s32.totalorder %s23, 0
      %p85 = por %p83, %p84
      %s86 = ssub.s32 %s25, %s32
      %p87 = scmp.eq.s32.totalorder %s86, 0
      %s89 = sadd.s32 %s88, 1
      %s90 = scalar_select %p87, %s88, %s89
      %p93 = pneg %p87
      %p94 = scmp.eq.s32.totalorder %s17, 2
      %p95 = por %p93, %p94
      %p96 = scmp.ne.s32.totalorder %s88, %s91
      %p97 = scmp.eq.s32.totalorder %s17, 0
      %p98 = por %p96, %p97
      %p99 = scmp.ne.s32.totalorder %s88, %s91
      %p100 = scmp.eq.s32.totalorder %s22, 2
      %p101 = por %p99, %p100
      %p102 = scmp.ne.s32.totalorder %s91, %s92
      %p103 = scmp.eq.s32.totalorder %s22, 0
      %p104 = por %p102, %p103
      %p105 = scmp.ne.s32.totalorder %s91, %s92
      %p106 = scmp.eq.s32.totalorder %s23, 2
      %p107 = por %p105, %p106
      %p109 = scmp.ne.s32.totalorder %s92, %s108
      %p110 = scmp.eq.s32.totalorder %s23, 0
      %p111 = por %p109, %p110
      %s112 = ssub.s32 %s24, %s36
      %p113 = scmp.eq.s32.totalorder %s112, 0
      %s115 = sadd.s32 %s114, 1
      %s116 = scalar_select %p113, %s114, %s115
      %p119 = pneg %p113
      %p120 = scmp.eq.s32.totalorder %s17, 2
      %p121 = por %p119, %p120
      %p122 = scmp.ne.s32.totalorder %s114, %s117
      %p123 = scmp.eq.s32.totalorder %s17, 0
      %p124 = por %p122, %p123
      %p125 = scmp.ne.s32.totalorder %s114, %s117
      %p126 = scmp.eq.s32.totalorder %s22, 2
      %p127 = por %p125, %p126
      %p128 = scmp.ne.s32.totalorder %s117, %s118
      %p129 = scmp.eq.s32.totalorder %s22, 0
      %p130 = por %p128, %p129
      %p131 = scmp.ne.s32.totalorder %s117, %s118
      %p132 = scmp.eq.s32.totalorder %s23, 2
      %p133 = por %p131, %p132
      %p135 = scmp.ne.s32.totalorder %s118, %s134
      %p136 = scmp.eq.s32.totalorder %s23, 0
      %p137 = por %p135, %p136
      %p138 = scmp.le.s32.totalorder 1, %s17
      %p139 = scmp.lt.s32.totalorder %s17, 4
      %p140 = pnand %p138, %p139
      %p141 = pneg %p140
      // Predicated region
      $region9: #{tpu_custom_call.1} parent=5 // pred_check
        _
      $region10: #{tpu_custom_call.1} parent=5 // pred_check_branch
        %143 = sbr.rel (%p140) target = $region12
      $region11: #{tpu_custom_call.1} parent=5 // pred_region
        %s144 = ssub.s32 %s17, 1
        // Predicated region
        $region13: #{tpu_custom_call.1} parent=11 // pred_check
          %p145 = pneg %p50
        $region14: #{tpu_custom_call.1} parent=11 // pred_check_branch
          %147 = sbr.rel (%p145) target = $region16
        $region15: #{tpu_custom_call.1} parent=11 // pred_region
          _
        $region16: #{tpu_custom_call.1} parent=11 // pred_fallthru
          _
      $region12: #{tpu_custom_call.1} parent=5 // pred_fallthru
        _
      %p148 = scmp.lt.s32.totalorder %s17, 3
      // Predicated region
      $region17: #{tpu_custom_call.1} parent=5 // pred_check
        %p149 = pneg %p148
      $region18: #{tpu_custom_call.1} parent=5 // pred_check_branch
        %151 = sbr.rel (%p149) target = $region20
      $region19: #{tpu_custom_call.1} parent=5 // pred_region
        // Predicated region
        $region21: #{tpu_custom_call.1} parent=19 // pred_check
          %p152 = pneg %p72
        $region22: #{tpu_custom_call.1} parent=19 // pred_check_branch
          %154 = sbr.rel (%p152) target = $region24
        $region23: #{tpu_custom_call.1} parent=19 // pred_region
          %s155 = sand.u32 %s62, 1
          %s156 = scalar_lea.sflag [#allocation5], %s155
          %s157 = sand.u32 %s62, 1
          %s158 = smul.addr %s157, 128
          %s159 = scalar_lea.vmem [#allocation4], %s158
          %s160 = smul.u32 16, %s24
          %s161 = smul.u32 2, %s25
          %163 = vsyncadd %s156, 0
          %s164 = smul.addr %s160, 6
          %s165 = sadd.s32 %s161, %s164
          %s166 = smul.addr %s165, 4
          %s167 = scalar_lea.hbm %s1, %s166
          %s168 = sshll.u32 %s167, 4
          %s169 = int_to_ptr.hbm [resolvable:$true] %s168
          %s170 = sshll.u32 %s159, 4
          %s171 = int_to_ptr.vmem [resolvable:$true] %s170
          %176 = dma.hbm_to_vmem [thread:$0]  %s169, 2048, %s171, %s156, 384, 128, 8
        $region24: #{tpu_custom_call.1} parent=19 // pred_fallthru
          _
        // Predicated region
        $region25: #{tpu_custom_call.1} parent=19 // pred_check
          %p177 = pneg %p98
        $region26: #{tpu_custom_call.1} parent=19 // pred_check_branch
          %179 = sbr.rel (%p177) target = $region28
        $region27: #{tpu_custom_call.1} parent=19 // pred_region
          %s180 = sand.u32 %s88, 1
          %s181 = scalar_lea.sflag [#allocation8], %s180
          %s182 = sand.u32 %s88, 1
          %s183 = smul.addr %s182, 128
          %s184 = scalar_lea.vmem [#allocation7], %s183
          %s185 = smul.u32 32, %s25
          %187 = vsyncadd %s181, 0
          %s188 = smul.addr %s185, 4
          %s189 = scalar_lea.hbm %s2, %s188
          %s190 = sshll.u32 %s189, 4
          %s191 = int_to_ptr.hbm [resolvable:$true] %s190
          %s192 = sshll.u32 %s184, 4
          %s193 = int_to_ptr.vmem [resolvable:$true] %s192
          %198 = dma.hbm_to_vmem [thread:$0]  %s191, 2048, %s193, %s181, 64, 64, 4
        $region28: #{tpu_custom_call.1} parent=19 // pred_fallthru
          _
      $region20: #{tpu_custom_call.1} parent=5 // pred_fallthru
        _
      %p199 = scmp.le.s32.totalorder 1, %s17
      %p200 = scmp.lt.s32.totalorder %s17, 4
      %p201 = pnand %p199, %p200
      %p202 = pneg %p201
      // Predicated region
      $region29: #{tpu_custom_call.1} parent=5 // pred_check
        _
      $region30: #{tpu_custom_call.1} parent=5 // pred_check_branch
        %204 = sbr.rel (%p201) target = $region32
      $region31: #{tpu_custom_call.1} parent=5 // pred_region
        %s205 = ssub.s32 %s17, 1
        %s206 = sand.u32 %s65, 1
        %s207 = scalar_lea.sflag [#allocation5], %s206
        %s208 = sand.u32 %s65, 1
        %s209 = smul.addr %s208, 128
        %s210 = scalar_lea.vmem [#allocation4], %s209
        // Predicated region
        $region33: #{tpu_custom_call.1} parent=31 // pred_check
          %p211 = pneg %p78
        $region34: #{tpu_custom_call.1} parent=31 // pred_check_branch
          %213 = sbr.rel (%p211) target = $region36
        $region35: #{tpu_custom_call.1} parent=31 // pred_region
          %215 = dma.done %s207, 2048
        $region36: #{tpu_custom_call.1} parent=31 // pred_fallthru
          _
        %s216 = sand.u32 %s91, 1
        %s217 = scalar_lea.sflag [#allocation8], %s216
        %s218 = sand.u32 %s91, 1
        %s219 = smul.addr %s218, 128
        %s220 = scalar_lea.vmem [#allocation7], %s219
        // Predicated region
        $region37: #{tpu_custom_call.1} parent=31 // pred_check
          %p221 = pneg %p104
        $region38: #{tpu_custom_call.1} parent=31 // pred_check_branch
          %223 = sbr.rel (%p221) target = $region40
        $region39: #{tpu_custom_call.1} parent=31 // pred_region
          %225 = dma.done %s217, 2048
        $region40: #{tpu_custom_call.1} parent=31 // pred_fallthru
          _
        %p226 = pneg %p50
        %p227 = pneg %p47
        %s228 = sand.u32 %s65, 1
        %s229 = scalar_lea.sflag [#allocation5], %s228
        %s230 = sand.u32 %s65, 1
        %s231 = smul.addr %s230, 128
        %s232 = scalar_lea.vmem [#allocation4], %s231
        %p233 = pneg %p78
        %p234 = pneg %p75
        %s235 = sand.u32 %s91, 1
        %s236 = scalar_lea.sflag [#allocation8], %s235
        %s237 = sand.u32 %s91, 1
        %s238 = smul.addr %s237, 128
        %s239 = scalar_lea.vmem [#allocation7], %s238
        %p240 = pneg %p104
        %p241 = pneg %p101
        %p242 = pneg %p130
        %p243 = pneg %p127
        %s244 = smul.u32 16, %s26
        %s245 = smul.u32 2, %s27
        %s246 = smul.u32 32, %s27
        %s247 = smul.u32 16, %s26
        %p248 = scmp.eq.s32.totalorder %s27, 0
        // Predicated region
        $region41: #{tpu_custom_call.1} parent=31 // pred_check
          %p249 = pneg %p248
        $region42: #{tpu_custom_call.1} parent=31 // pred_check_branch
          %251 = sbr.rel (%p249) target = $region44
        $region43: #{tpu_custom_call.1} parent=31 // pred_region
          %252 = vst [vmem:[#allocation2] sm:$0xff] 0.0
          %253 = vst [vmem:[#allocation2 + $0x8] sm:$0xff] 0.0
          %254 = vst [vmem:[#allocation2 + $0x10] sm:$0xff] 0.0
          %255 = vst [vmem:[#allocation2 + $0x18] sm:$0xff] 0.0
          %256 = vst [vmem:[#allocation2 + $0x20] sm:$0xff] 0.0
          %257 = vst [vmem:[#allocation2 + $0x28] sm:$0xff] 0.0
          %258 = vst [vmem:[#allocation2 + $0x30] sm:$0xff] 0.0
          %259 = vst [vmem:[#allocation2 + $0x38] sm:$0xff] 0.0
          %260 = vst [vmem:[#allocation2 + $0x40] sm:$0xff] 0.0
          %261 = vst [vmem:[#allocation2 + $0x48] sm:$0xff] 0.0
          %262 = vst [vmem:[#allocation2 + $0x50] sm:$0xff] 0.0
          %263 = vst [vmem:[#allocation2 + $0x58] sm:$0xff] 0.0
          %264 = vst [vmem:[#allocation2 + $0x60] sm:$0xff] 0.0
          %265 = vst [vmem:[#allocation2 + $0x68] sm:$0xff] 0.0
          %266 = vst [vmem:[#allocation2 + $0x70] sm:$0xff] 0.0
          %267 = vst [vmem:[#allocation2 + $0x78] sm:$0xff] 0.0
        $region44: #{tpu_custom_call.1} parent=31 // pred_fallthru
          _
        %v268 = vld [vmem:[#allocation2] sm:$0xff]
        %v269 = vld [vmem:[#allocation2 + $0x8] sm:$0xff]
        %v270 = vld [vmem:[#allocation2 + $0x10] sm:$0xff]
        %v271 = vld [vmem:[#allocation2 + $0x18] sm:$0xff]
        %v272 = vld [vmem:[#allocation2 + $0x20] sm:$0xff]
        %v273 = vld [vmem:[#allocation2 + $0x28] sm:$0xff]
        %v274 = vld [vmem:[#allocation2 + $0x30] sm:$0xff]
        %v275 = vld [vmem:[#allocation2 + $0x38] sm:$0xff]
        %v276 = vld [vmem:[#allocation2 + $0x40] sm:$0xff]
        %v277 = vld [vmem:[#allocation2 + $0x48] sm:$0xff]
        %v278 = vld [vmem:[#allocation2 + $0x50] sm:$0xff]
        %v279 = vld [vmem:[#allocation2 + $0x58] sm:$0xff]
        %v280 = vld [vmem:[#allocation2 + $0x60] sm:$0xff]
        %v281 = vld [vmem:[#allocation2 + $0x68] sm:$0xff]
        %v282 = vld [vmem:[#allocation2 + $0x70] sm:$0xff]
        %v283 = vld [vmem:[#allocation2 + $0x78] sm:$0xff]
        %v284 = vld [vmem:[%s210] sm:$0xff]
        %v285 = vld [vmem:[%s210 + $0x8] sm:$0xff]
        %v286 = vld [vmem:[%s210 + $0x10] sm:$0xff]
        %v287 = vld [vmem:[%s210 + $0x18] sm:$0xff]
        %v288 = vld [vmem:[%s210 + $0x20] sm:$0xff]
        %v289 = vld [vmem:[%s210 + $0x28] sm:$0xff]
        %v290 = vld [vmem:[%s210 + $0x30] sm:$0xff]
        %v291 = vld [vmem:[%s210 + $0x38] sm:$0xff]
        %v292 = vld [vmem:[%s210 + $0x40] sm:$0xff]
        %v293 = vld [vmem:[%s210 + $0x48] sm:$0xff]
        %v294 = vld [vmem:[%s210 + $0x50] sm:$0xff]
        %v295 = vld [vmem:[%s210 + $0x58] sm:$0xff]
        %v296 = vld [vmem:[%s210 + $0x60] sm:$0xff]
        %v297 = vld [vmem:[%s210 + $0x68] sm:$0xff]
        %v298 = vld [vmem:[%s210 + $0x70] sm:$0xff]
        %v299 = vld [vmem:[%s210 + $0x78] sm:$0xff]
        %v300 = vld [vmem:[%s220] sm:$0xf]
        %v301 = vld [vmem:[%s220 + $0x4] sm:$0xf]
        %v302 = vld [vmem:[%s220 + $0x8] sm:$0xf]
        %v303 = vld [vmem:[%s220 + $0xc] sm:$0xf]
        %v304 = vld [vmem:[%s220 + $0x10] sm:$0xf]
        %v305 = vld [vmem:[%s220 + $0x14] sm:$0xf]
        %v306 = vld [vmem:[%s220 + $0x18] sm:$0xf]
        %v307 = vld [vmem:[%s220 + $0x1c] sm:$0xf]
        %v308 = vld [vmem:[%s220 + $0x20] sm:$0xf]
        %v309 = vld [vmem:[%s220 + $0x24] sm:$0xf]
        %v310 = vld [vmem:[%s220 + $0x28] sm:$0xf]
        %v311 = vld [vmem:[%s220 + $0x2c] sm:$0xf]
        %v312 = vld [vmem:[%s220 + $0x30] sm:$0xf]
        %v313 = vld [vmem:[%s220 + $0x34] sm:$0xf]
        %v314 = vld [vmem:[%s220 + $0x38] sm:$0xf]
        %v315 = vld [vmem:[%s220 + $0x3c] sm:$0xf]
        %v316 = vld [vmem:[%s220 + $0x40] sm:$0xf]
        %v317 = vld [vmem:[%s220 + $0x44] sm:$0xf]
        %v318 = vld [vmem:[%s220 + $0x48] sm:$0xf]
        %v319 = vld [vmem:[%s220 + $0x4c] sm:$0xf]
        %v320 = vld [vmem:[%s220 + $0x50] sm:$0xf]
        %v321 = vld [vmem:[%s220 + $0x54] sm:$0xf]
        %v322 = vld [vmem:[%s220 + $0x58] sm:$0xf]
        %v323 = vld [vmem:[%s220 + $0x5c] sm:$0xf]
        %v324 = vld [vmem:[%s220 + $0x60] sm:$0xf]
        %v325 = vld [vmem:[%s220 + $0x64] sm:$0xf]
        %v326 = vld [vmem:[%s220 + $0x68] sm:$0xf]
        %v327 = vld [vmem:[%s220 + $0x6c] sm:$0xf]
        %v328 = vld [vmem:[%s220 + $0x70] sm:$0xf]
        %v329 = vld [vmem:[%s220 + $0x74] sm:$0xf]
        %v330 = vld [vmem:[%s220 + $0x78] sm:$0xf]
        %v331 = vld [vmem:[%s220 + $0x7c] sm:$0xf]
        %v348 = vunpack.c.l.b16 %v284
        %v349 = vunpack.c.h.b16 %v284
        %v350 = vunpack.c.l.b16 %v285
        %v351 = vunpack.c.h.b16 %v285
        %v352 = vunpack.c.l.b16 %v286
        %v353 = vunpack.c.h.b16 %v286
        %v354 = vunpack.c.l.b16 %v287
        %v355 = vunpack.c.h.b16 %v287
        %v356 = vunpack.c.l.b16 %v288
        %v357 = vunpack.c.h.b16 %v288
        %v358 = vunpack.c.l.b16 %v289
        %v359 = vunpack.c.h.b16 %v289
        %v360 = vunpack.c.l.b16 %v290
        %v361 = vunpack.c.h.b16 %v290
        %v362 = vunpack.c.l.b16 %v291
        %v363 = vunpack.c.h.b16 %v291
        %v364 = vunpack.c.l.b16 %v292
        %v365 = vunpack.c.h.b16 %v292
        %v366 = vunpack.c.l.b16 %v293
        %v367 = vunpack.c.h.b16 %v293
        %v368 = vunpack.c.l.b16 %v294
        %v369 = vunpack.c.h.b16 %v294
        %v370 = vunpack.c.l.b16 %v295
        %v371 = vunpack.c.h.b16 %v295
        %v372 = vunpack.c.l.b16 %v296
        %v373 = vunpack.c.h.b16 %v296
        %v374 = vunpack.c.l.b16 %v297
        %v375 = vunpack.c.h.b16 %v297
        %v376 = vunpack.c.l.b16 %v298
        %v377 = vunpack.c.h.b16 %v298
        %v378 = vunpack.c.l.b16 %v299
        %v379 = vunpack.c.h.b16 %v299
        %v380 = vpack.c.b16 %v350, %v348
        %v381 = vpack.c.b16 %v351, %v349
        %v382 = vpack.c.b16 %v354, %v352
        %v383 = vpack.c.b16 %v355, %v353
        %v384 = vpack.c.b16 %v358, %v356
        %v385 = vpack.c.b16 %v359, %v357
        %v386 = vpack.c.b16 %v362, %v360
        %v387 = vpack.c.b16 %v363, %v361
        %v388 = vpack.c.b16 %v366, %v364
        %v389 = vpack.c.b16 %v367, %v365
        %v390 = vpack.c.b16 %v370, %v368
        %v391 = vpack.c.b16 %v371, %v369
        %v392 = vpack.c.b16 %v374, %v372
        %v393 = vpack.c.b16 %v375, %v373
        %v394 = vpack.c.b16 %v378, %v376
        %v395 = vpack.c.b16 %v379, %v377
        %v444 = vunpack.c.l.b16 %v300
        %v445 = vunpack.c.l.b16 %v301
        %v446 = vunpack.c.l.b16 %v302
        %v447 = vunpack.c.l.b16 %v303
        %v448 = vunpack.c.l.b16 %v304
        %v449 = vunpack.c.l.b16 %v305
        %v450 = vunpack.c.l.b16 %v306
        %v451 = vunpack.c.l.b16 %v307
        %v452 = vunpack.c.l.b16 %v308
        %v453 = vunpack.c.l.b16 %v309
        %v454 = vunpack.c.l.b16 %v310
        %v455 = vunpack.c.l.b16 %v311
        %v456 = vunpack.c.l.b16 %v312
        %v457 = vunpack.c.l.b16 %v313
        %v458 = vunpack.c.l.b16 %v314
        %v459 = vunpack.c.l.b16 %v315
        %v460 = vunpack.c.l.b16 %v316
        %v461 = vunpack.c.l.b16 %v317
        %v462 = vunpack.c.l.b16 %v318
        %v463 = vunpack.c.l.b16 %v319
        %v464 = vunpack.c.l.b16 %v320
        %v465 = vunpack.c.l.b16 %v321
        %v466 = vunpack.c.l.b16 %v322
        %v467 = vunpack.c.l.b16 %v323
        %v468 = vunpack.c.l.b16 %v324
        %v469 = vunpack.c.l.b16 %v325
        %v470 = vunpack.c.l.b16 %v326
        %v471 = vunpack.c.l.b16 %v327
        %v472 = vunpack.c.l.b16 %v328
        %v473 = vunpack.c.l.b16 %v329
        %v474 = vunpack.c.l.b16 %v330
        %v475 = vunpack.c.l.b16 %v331
        %v476 = vpack.c.b16 %v445, %v444
        %v477 = vpack.c.b16 %v447, %v446
        %v478 = vpack.c.b16 %v449, %v448
        %v479 = vpack.c.b16 %v451, %v450
        %v480 = vpack.c.b16 %v453, %v452
        %v481 = vpack.c.b16 %v455, %v454
        %v482 = vpack.c.b16 %v457, %v456
        %v483 = vpack.c.b16 %v459, %v458
        %v484 = vpack.c.b16 %v461, %v460
        %v485 = vpack.c.b16 %v463, %v462
        %v486 = vpack.c.b16 %v465, %v464
        %v487 = vpack.c.b16 %v467, %v466
        %v488 = vpack.c.b16 %v469, %v468
        %v489 = vpack.c.b16 %v471, %v470
        %v490 = vpack.c.b16 %v473, %v472
        %v491 = vpack.c.b16 %v475, %v474
        %508 = vmatpush.bf16.msra.mxu0 %v483
        %509 = vmatpush.bf16.msra.mxu0 %v482
        %510 = vmatpush.bf16.msra.mxu0 %v481
        %511 = vmatpush.bf16.msra.mxu0 %v480
        %512 = vmatpush.bf16.msra.mxu0 %v479
        %513 = vmatpush.bf16.msra.mxu0 %v478
        %514 = vmatpush.bf16.msra.mxu0 %v477
        %515 = vmatpush.bf16.msra.mxu0 %v476
        %516 = vmatmul.bf16.gmra.mxu0 %v380
        %v517 = vpop.f32.mrf.mxu0
        %v518 = vadd.f32 0.0, %v517
        %v519 = vpop.f32.mrf.mxu0
        %v520 = vadd.f32 0.0, %v519
        %521 = vmatmul.bf16.gmra.mxu0 %v382
        %v522 = vpop.f32.mrf.mxu0
        %v523 = vadd.f32 0.0, %v522
        %v524 = vpop.f32.mrf.mxu0
        %v525 = vadd.f32 0.0, %v524
        %526 = vmatmul.bf16.gmra.mxu0 %v384
        %v527 = vpop.f32.mrf.mxu0
        %v528 = vadd.f32 0.0, %v527
        %v529 = vpop.f32.mrf.mxu0
        %v530 = vadd.f32 0.0, %v529
        %531 = vmatmul.bf16.gmra.mxu0 %v386
        %v532 = vpop.f32.mrf.mxu0
        %v533 = vadd.f32 0.0, %v532
        %v534 = vpop.f32.mrf.mxu0
        %v535 = vadd.f32 0.0, %v534
        %536 = vmatmul.bf16.gmra.mxu0 %v388
        %v537 = vpop.f32.mrf.mxu0
        %v538 = vadd.f32 0.0, %v537
        %v539 = vpop.f32.mrf.mxu0
        %v540 = vadd.f32 0.0, %v539
        %541 = vmatmul.bf16.gmra.mxu0 %v390
        %v542 = vpop.f32.mrf.mxu0
        %v543 = vadd.f32 0.0, %v542
        %v544 = vpop.f32.mrf.mxu0
        %v545 = vadd.f32 0.0, %v544
        %546 = vmatmul.bf16.gmra.mxu0 %v392
        %v547 = vpop.f32.mrf.mxu0
        %v548 = vadd.f32 0.0, %v547
        %v549 = vpop.f32.mrf.mxu0
        %v550 = vadd.f32 0.0, %v549
        %551 = vmatmul.bf16.gmra.mxu0 %v394
        %v552 = vpop.f32.mrf.mxu0
        %v553 = vadd.f32 0.0, %v552
        %v554 = vpop.f32.mrf.mxu0
        %v555 = vadd.f32 0.0, %v554
        %556 = vdwg.mxu0
        %557 = vmatpush.bf16.msra.mxu0 %v491
        %558 = vmatpush.bf16.msra.mxu0 %v490
        %559 = vmatpush.bf16.msra.mxu0 %v489
        %560 = vmatpush.bf16.msra.mxu0 %v488
        %561 = vmatpush.bf16.msra.mxu0 %v487
        %562 = vmatpush.bf16.msra.mxu0 %v486
        %563 = vmatpush.bf16.msra.mxu0 %v485
        %564 = vmatpush.bf16.msra.mxu0 %v484
        %565 = vmatmul.bf16.gmra.mxu0 %v381
        %v566 = vpop.f32.mrf.mxu0
        %v567 = vadd.f32 %v518, %v566
        %v568 = vpop.f32.mrf.mxu0
        %v569 = vadd.f32 %v520, %v568
        %570 = vmatmul.bf16.gmra.mxu0 %v383
        %v571 = vpop.f32.mrf.mxu0
        %v572 = vadd.f32 %v523, %v571
        %v573 = vpop.f32.mrf.mxu0
        %v574 = vadd.f32 %v525, %v573
        %575 = vmatmul.bf16.gmra.mxu0 %v385
        %v576 = vpop.f32.mrf.mxu0
        %v577 = vadd.f32 %v528, %v576
        %v578 = vpop.f32.mrf.mxu0
        %v579 = vadd.f32 %v530, %v578
        %580 = vmatmul.bf16.gmra.mxu0 %v387
        %v581 = vpop.f32.mrf.mxu0
        %v582 = vadd.f32 %v533, %v581
        %v583 = vpop.f32.mrf.mxu0
        %v584 = vadd.f32 %v535, %v583
        %585 = vmatmul.bf16.gmra.mxu0 %v389
        %v586 = vpop.f32.mrf.mxu0
        %v587 = vadd.f32 %v538, %v586
        %v588 = vpop.f32.mrf.mxu0
        %v589 = vadd.f32 %v540, %v588
        %590 = vmatmul.bf16.gmra.mxu0 %v391
        %v591 = vpop.f32.mrf.mxu0
        %v592 = vadd.f32 %v543, %v591
        %v593 = vpop.f32.mrf.mxu0
        %v594 = vadd.f32 %v545, %v593
        %595 = vmatmul.bf16.gmra.mxu0 %v393
        %v596 = vpop.f32.mrf.mxu0
        %v597 = vadd.f32 %v548, %v596
        %v598 = vpop.f32.mrf.mxu0
        %v599 = vadd.f32 %v550, %v598
        %600 = vmatmul.bf16.gmra.mxu0 %v395
        %v601 = vpop.f32.mrf.mxu0
        %v602 = vadd.f32 %v553, %v601
        %v603 = vpop.f32.mrf.mxu0
        %v604 = vadd.f32 %v555, %v603
        %605 = vdwg.mxu0
        %v606 = vadd.f32 %v268, %v567
        %v607 = vadd.f32 %v269, %v569
        %v608 = vadd.f32 %v270, %v572
        %v609 = vadd.f32 %v271, %v574
        %v610 = vadd.f32 %v272, %v577
        %v611 = vadd.f32 %v273, %v579
        %v612 = vadd.f32 %v274, %v582
        %v613 = vadd.f32 %v275, %v584
        %v614 = vadd.f32 %v276, %v587
        %v615 = vadd.f32 %v277, %v589
        %v616 = vadd.f32 %v278, %v592
        %v617 = vadd.f32 %v279, %v594
        %v618 = vadd.f32 %v280, %v597
        %v619 = vadd.f32 %v281, %v599
        %v620 = vadd.f32 %v282, %v602
        %v621 = vadd.f32 %v283, %v604
        %622 = vst [vmem:[#allocation2] sm:$0xff] %v606
        %623 = vst [vmem:[#allocation2 + $0x8] sm:$0xff] %v607
        %624 = vst [vmem:[#allocation2 + $0x10] sm:$0xff] %v608
        %625 = vst [vmem:[#allocation2 + $0x18] sm:$0xff] %v609
        %626 = vst [vmem:[#allocation2 + $0x20] sm:$0xff] %v610
        %627 = vst [vmem:[#allocation2 + $0x28] sm:$0xff] %v611
        %628 = vst [vmem:[#allocation2 + $0x30] sm:$0xff] %v612
        %629 = vst [vmem:[#allocation2 + $0x38] sm:$0xff] %v613
        %630 = vst [vmem:[#allocation2 + $0x40] sm:$0xff] %v614
        %631 = vst [vmem:[#allocation2 + $0x48] sm:$0xff] %v615
        %632 = vst [vmem:[#allocation2 + $0x50] sm:$0xff] %v616
        %633 = vst [vmem:[#allocation2 + $0x58] sm:$0xff] %v617
        %634 = vst [vmem:[#allocation2 + $0x60] sm:$0xff] %v618
        %635 = vst [vmem:[#allocation2 + $0x68] sm:$0xff] %v619
        %636 = vst [vmem:[#allocation2 + $0x70] sm:$0xff] %v620
        %637 = vst [vmem:[#allocation2 + $0x78] sm:$0xff] %v621
        %p638 = scmp.eq.s32.totalorder %s27, 2
        // Predicated region
        $region45: #{tpu_custom_call.1} parent=31 // pred_check
          %p639 = pneg %p638
        $region46: #{tpu_custom_call.1} parent=31 // pred_check_branch
          %641 = sbr.rel (%p639) target = $region48
        $region47: #{tpu_custom_call.1} parent=31 // pred_region
          %v642 = vld [vmem:[#allocation2] sm:$0xff]
          %v643 = vld [vmem:[#allocation2 + $0x8] sm:$0xff]
          %v644 = vld [vmem:[#allocation2 + $0x10] sm:$0xff]
          %v645 = vld [vmem:[#allocation2 + $0x18] sm:$0xff]
          %v646 = vld [vmem:[#allocation2 + $0x20] sm:$0xff]
          %v647 = vld [vmem:[#allocation2 + $0x28] sm:$0xff]
          %v648 = vld [vmem:[#allocation2 + $0x30] sm:$0xff]
          %v649 = vld [vmem:[#allocation2 + $0x38] sm:$0xff]
          %v650 = vld [vmem:[#allocation2 + $0x40] sm:$0xff]
          %v651 = vld [vmem:[#allocation2 + $0x48] sm:$0xff]
          %v652 = vld [vmem:[#allocation2 + $0x50] sm:$0xff]
          %v653 = vld [vmem:[#allocation2 + $0x58] sm:$0xff]
          %v654 = vld [vmem:[#allocation2 + $0x60] sm:$0xff]
          %v655 = vld [vmem:[#allocation2 + $0x68] sm:$0xff]
          %v656 = vld [vmem:[#allocation2 + $0x70] sm:$0xff]
          %v657 = vld [vmem:[#allocation2 + $0x78] sm:$0xff]
          %v658 = vmul.f32 %v642, %v642
          %v659 = vmul.f32 %v643, %v643
          %v660 = vmul.f32 %v644, %v644
          %v661 = vmul.f32 %v645, %v645
          %v662 = vmul.f32 %v646, %v646
          %v663 = vmul.f32 %v647, %v647
          %v664 = vmul.f32 %v648, %v648
          %v665 = vmul.f32 %v649, %v649
          %v666 = vmul.f32 %v650, %v650
          %v667 = vmul.f32 %v651, %v651
          %v668 = vmul.f32 %v652, %v652
          %v669 = vmul.f32 %v653, %v653
          %v670 = vmul.f32 %v654, %v654
          %v671 = vmul.f32 %v655, %v655
          %v672 = vmul.f32 %v656, %v656
          %v673 = vmul.f32 %v657, %v657
          %674 = vadd.xlane.f32.xlu0 %v658
          %v675 = vpop.xlane.xlu0 %674
          %676 = vadd.xlane.f32.xlu0 %v659
          %v677 = vpop.xlane.xlu0 %676
          %678 = vadd.xlane.f32.xlu0 %v660
          %v679 = vpop.xlane.xlu0 %678
          %680 = vadd.xlane.f32.xlu0 %v661
          %v681 = vpop.xlane.xlu0 %680
          %682 = vadd.xlane.f32.xlu0 %v662
          %v683 = vpop.xlane.xlu0 %682
          %684 = vadd.xlane.f32.xlu0 %v663
          %v685 = vpop.xlane.xlu0 %684
          %686 = vadd.xlane.f32.xlu0 %v664
          %v687 = vpop.xlane.xlu0 %686
          %688 = vadd.xlane.f32.xlu0 %v665
          %v689 = vpop.xlane.xlu0 %688
          %690 = vadd.xlane.f32.xlu0 %v666
          %v691 = vpop.xlane.xlu0 %690
          %692 = vadd.xlane.f32.xlu0 %v667
          %v693 = vpop.xlane.xlu0 %692
          %694 = vadd.xlane.f32.xlu0 %v668
          %v695 = vpop.xlane.xlu0 %694
          %696 = vadd.xlane.f32.xlu0 %v669
          %v697 = vpop.xlane.xlu0 %696
          %698 = vadd.xlane.f32.xlu0 %v670
          %v699 = vpop.xlane.xlu0 %698
          %700 = vadd.xlane.f32.xlu0 %v671
          %v701 = vpop.xlane.xlu0 %700
          %702 = vadd.xlane.f32.xlu0 %v672
          %v703 = vpop.xlane.xlu0 %702
          %704 = vadd.xlane.f32.xlu0 %v673
          %v705 = vpop.xlane.xlu0 %704
          %v706 = vmax.f32 %v675, 1e-30
          %v707 = vmax.f32 %v677, 1e-30
          %v708 = vmax.f32 %v679, 1e-30
          %v709 = vmax.f32 %v681, 1e-30
          %v710 = vmax.f32 %v683, 1e-30
          %v711 = vmax.f32 %v685, 1e-30
          %v712 = vmax.f32 %v687, 1e-30
          %v713 = vmax.f32 %v689, 1e-30
          %v714 = vmax.f32 %v691, 1e-30
          %v715 = vmax.f32 %v693, 1e-30
          %v716 = vmax.f32 %v695, 1e-30
          %v717 = vmax.f32 %v697, 1e-30
          %v718 = vmax.f32 %v699, 1e-30
          %v719 = vmax.f32 %v701, 1e-30
          %v720 = vmax.f32 %v703, 1e-30
          %v721 = vmax.f32 %v705, 1e-30
          %v722 = vrsqrt.pop %v706
          %v723 = vmul.f32 %v722, %v706
          %v724 = vmul.f32 %v723, %v722
          %v725 = vmul.f32 0.5, %v724
          %v726 = vsub.f32 1.5, %v725
          %v727 = vmul.f32 %v722, %v726
          %vm728 = vweird.f32 %v706
          %vm729 = vweird.f32 %v722
          %vm730 = vmor %vm728, %vm729
          %v731 = vsel %vm730, %v722, %v727
          %v732 = vrsqrt.pop %v707
          %v733 = vmul.f32 %v732, %v707
          %v734 = vmul.f32 %v733, %v732
          %v735 = vmul.f32 0.5, %v734
          %v736 = vsub.f32 1.5, %v735
          %v737 = vmul.f32 %v732, %v736
          %vm738 = vweird.f32 %v707
          %vm739 = vweird.f32 %v732
          %vm740 = vmor %vm738, %vm739
          %v741 = vsel %vm740, %v732, %v737
          %v742 = vrsqrt.pop %v708
          %v743 = vmul.f32 %v742, %v708
          %v744 = vmul.f32 %v743, %v742
          %v745 = vmul.f32 0.5, %v744
          %v746 = vsub.f32 1.5, %v745
          %v747 = vmul.f32 %v742, %v746
          %vm748 = vweird.f32 %v708
          %vm749 = vweird.f32 %v742
          %vm750 = vmor %vm748, %vm749
          %v751 = vsel %vm750, %v742, %v747
          %v752 = vrsqrt.pop %v709
          %v753 = vmul.f32 %v752, %v709
          %v754 = vmul.f32 %v753, %v752
          %v755 = vmul.f32 0.5, %v754
          %v756 = vsub.f32 1.5, %v755
          %v757 = vmul.f32 %v752, %v756
          %vm758 = vweird.f32 %v709
          %vm759 = vweird.f32 %v752
          %vm760 = vmor %vm758, %vm759
          %v761 = vsel %vm760, %v752, %v757
          %v762 = vrsqrt.pop %v710
          %v763 = vmul.f32 %v762, %v710
          %v764 = vmul.f32 %v763, %v762
          %v765 = vmul.f32 0.5, %v764
          %v766 = vsub.f32 1.5, %v765
          %v767 = vmul.f32 %v762, %v766
          %vm768 = vweird.f32 %v710
          %vm769 = vweird.f32 %v762
          %vm770 = vmor %vm768, %vm769
          %v771 = vsel %vm770, %v762, %v767
          %v772 = vrsqrt.pop %v711
          %v773 = vmul.f32 %v772, %v711
          %v774 = vmul.f32 %v773, %v772
          %v775 = vmul.f32 0.5, %v774
          %v776 = vsub.f32 1.5, %v775
          %v777 = vmul.f32 %v772, %v776
          %vm778 = vweird.f32 %v711
          %vm779 = vweird.f32 %v772
          %vm780 = vmor %vm778, %vm779
          %v781 = vsel %vm780, %v772, %v777
          %v782 = vrsqrt.pop %v712
          %v783 = vmul.f32 %v782, %v712
          %v784 = vmul.f32 %v783, %v782
          %v785 = vmul.f32 0.5, %v784
          %v786 = vsub.f32 1.5, %v785
          %v787 = vmul.f32 %v782, %v786
          %vm788 = vweird.f32 %v712
          %vm789 = vweird.f32 %v782
          %vm790 = vmor %vm788, %vm789
          %v791 = vsel %vm790, %v782, %v787
          %v792 = vrsqrt.pop %v713
          %v793 = vmul.f32 %v792, %v713
          %v794 = vmul.f32 %v793, %v792
          %v795 = vmul.f32 0.5, %v794
          %v796 = vsub.f32 1.5, %v795
          %v797 = vmul.f32 %v792, %v796
          %vm798 = vweird.f32 %v713
          %vm799 = vweird.f32 %v792
          %vm800 = vmor %vm798, %vm799
          %v801 = vsel %vm800, %v792, %v797
          %v802 = vrsqrt.pop %v714
          %v803 = vmul.f32 %v802, %v714
          %v804 = vmul.f32 %v803, %v802
          %v805 = vmul.f32 0.5, %v804
          %v806 = vsub.f32 1.5, %v805
          %v807 = vmul.f32 %v802, %v806
          %vm808 = vweird.f32 %v714
          %vm809 = vweird.f32 %v802
          %vm810 = vmor %vm808, %vm809
          %v811 = vsel %vm810, %v802, %v807
          %v812 = vrsqrt.pop %v715
          %v813 = vmul.f32 %v812, %v715
          %v814 = vmul.f32 %v813, %v812
          %v815 = vmul.f32 0.5, %v814
          %v816 = vsub.f32 1.5, %v815
          %v817 = vmul.f32 %v812, %v816
          %vm818 = vweird.f32 %v715
          %vm819 = vweird.f32 %v812
          %vm820 = vmor %vm818, %vm819
          %v821 = vsel %vm820, %v812, %v817
          %v822 = vrsqrt.pop %v716
          %v823 = vmul.f32 %v822, %v716
          %v824 = vmul.f32 %v823, %v822
          %v825 = vmul.f32 0.5, %v824
          %v826 = vsub.f32 1.5, %v825
          %v827 = vmul.f32 %v822, %v826
          %vm828 = vweird.f32 %v716
          %vm829 = vweird.f32 %v822
          %vm830 = vmor %vm828, %vm829
          %v831 = vsel %vm830, %v822, %v827
          %v832 = vrsqrt.pop %v717
          %v833 = vmul.f32 %v832, %v717
          %v834 = vmul.f32 %v833, %v832
          %v835 = vmul.f32 0.5, %v834
          %v836 = vsub.f32 1.5, %v835
          %v837 = vmul.f32 %v832, %v836
          %vm838 = vweird.f32 %v717
          %vm839 = vweird.f32 %v832
          %vm840 = vmor %vm838, %vm839
          %v841 = vsel %vm840, %v832, %v837
          %v842 = vrsqrt.pop %v718
          %v843 = vmul.f32 %v842, %v718
          %v844 = vmul.f32 %v843, %v842
          %v845 = vmul.f32 0.5, %v844
          %v846 = vsub.f32 1.5, %v845
          %v847 = vmul.f32 %v842, %v846
          %vm848 = vweird.f32 %v718
          %vm849 = vweird.f32 %v842
          %vm850 = vmor %vm848, %vm849
          %v851 = vsel %vm850, %v842, %v847
          %v852 = vrsqrt.pop %v719
          %v853 = vmul.f32 %v852, %v719
          %v854 = vmul.f32 %v853, %v852
          %v855 = vmul.f32 0.5, %v854
          %v856 = vsub.f32 1.5, %v855
          %v857 = vmul.f32 %v852, %v856
          %vm858 = vweird.f32 %v719
          %vm859 = vweird.f32 %v852
          %vm860 = vmor %vm858, %vm859
          %v861 = vsel %vm860, %v852, %v857
          %v862 = vrsqrt.pop %v720
          %v863 = vmul.f32 %v862, %v720
          %v864 = vmul.f32 %v863, %v862
          %v865 = vmul.f32 0.5, %v864
          %v866 = vsub.f32 1.5, %v865
          %v867 = vmul.f32 %v862, %v866
          %vm868 = vweird.f32 %v720
          %vm869 = vweird.f32 %v862
          %vm870 = vmor %vm868, %vm869
          %v871 = vsel %vm870, %v862, %v867
          %v872 = vrsqrt.pop %v721
          %v873 = vmul.f32 %v872, %v721
          %v874 = vmul.f32 %v873, %v872
          %v875 = vmul.f32 0.5, %v874
          %v876 = vsub.f32 1.5, %v875
          %v877 = vmul.f32 %v872, %v876
          %vm878 = vweird.f32 %v721
          %vm879 = vweird.f32 %v872
          %vm880 = vmor %vm878, %vm879
          %v881 = vsel %vm880, %v872, %v877
          %v882 = vmul.f32 %v642, %v731
          %v883 = vmul.f32 %v643, %v741
          %v884 = vmul.f32 %v644, %v751
          %v885 = vmul.f32 %v645, %v761
          %v886 = vmul.f32 %v646, %v771
          %v887 = vmul.f32 %v647, %v781
          %v888 = vmul.f32 %v648, %v791
          %v889 = vmul.f32 %v649, %v801
          %v890 = vmul.f32 %v650, %v811
          %v891 = vmul.f32 %v651, %v821
          %v892 = vmul.f32 %v652, %v831
          %v893 = vmul.f32 %v653, %v841
          %v894 = vmul.f32 %v654, %v851
          %v895 = vmul.f32 %v655, %v861
          %v896 = vmul.f32 %v656, %v871
          %v897 = vmul.f32 %v657, %v881
          %s898 = sld [smem:[#allocation3]]
          %v899 = vstv %s898
          %v900 = vmul.f32 %v882, %v899
          %v901 = vmul.f32 %v883, %v899
          %v902 = vmul.f32 %v884, %v899
          %v903 = vmul.f32 %v885, %v899
          %v904 = vmul.f32 %v886, %v899
          %v905 = vmul.f32 %v887, %v899
          %v906 = vmul.f32 %v888, %v899
          %v907 = vmul.f32 %v889, %v899
          %v908 = vmul.f32 %v890, %v899
          %v909 = vmul.f32 %v891, %v899
          %v910 = vmul.f32 %v892, %v899
          %v911 = vmul.f32 %v893, %v899
          %v912 = vmul.f32 %v894, %v899
          %v913 = vmul.f32 %v895, %v899
          %v914 = vmul.f32 %v896, %v899
          %v915 = vmul.f32 %v897, %v899
          %v916 = vpack.c.bf16 %v900, %v900
          %v917 = vpack.c.bf16 %v901, %v901
          %v918 = vpack.c.bf16 %v902, %v902
          %v919 = vpack.c.bf16 %v903, %v903
          %v920 = vpack.c.bf16 %v904, %v904
          %v921 = vpack.c.bf16 %v905, %v905
          %v922 = vpack.c.bf16 %v906, %v906
          %v923 = vpack.c.bf16 %v907, %v907
          %v924 = vpack.c.bf16 %v908, %v908
          %v925 = vpack.c.bf16 %v909, %v909
          %v926 = vpack.c.bf16 %v910, %v910
          %v927 = vpack.c.bf16 %v911, %v911
          %v928 = vpack.c.bf16 %v912, %v912
          %v929 = vpack.c.bf16 %v913, %v913
          %v930 = vpack.c.bf16 %v914, %v914
          %v931 = vpack.c.bf16 %v915, %v915
          %932 = vst [vmem:[#allocation9] sm:$0xf] %v916
          %933 = vst [vmem:[#allocation9 + $0x4] sm:$0xf] %v917
          %934 = vst [vmem:[#allocation9 + $0x8] sm:$0xf] %v918
          %935 = vst [vmem:[#allocation9 + $0xc] sm:$0xf] %v919
          %936 = vst [vmem:[#allocation9 + $0x10] sm:$0xf] %v920
          %937 = vst [vmem:[#allocation9 + $0x14] sm:$0xf] %v921
          %938 = vst [vmem:[#allocation9 + $0x18] sm:$0xf] %v922
          %939 = vst [vmem:[#allocation9 + $0x1c] sm:$0xf] %v923
          %940 = vst [vmem:[#allocation9 + $0x20] sm:$0xf] %v924
          %941 = vst [vmem:[#allocation9 + $0x24] sm:$0xf] %v925
          %942 = vst [vmem:[#allocation9 + $0x28] sm:$0xf] %v926
          %943 = vst [vmem:[#allocation9 + $0x2c] sm:$0xf] %v927
          %944 = vst [vmem:[#allocation9 + $0x30] sm:$0xf] %v928
          %945 = vst [vmem:[#allocation9 + $0x34] sm:$0xf] %v929
          %946 = vst [vmem:[#allocation9 + $0x38] sm:$0xf] %v930
          %947 = vst [vmem:[#allocation9 + $0x3c] sm:$0xf] %v931
        $region48: #{tpu_custom_call.1} parent=31 // pred_fallthru
          _
        // Predicated region
        $region49: #{tpu_custom_call.1} parent=31 // pred_check
          %p948 = pneg %p127
        $region50: #{tpu_custom_call.1} parent=31 // pred_check_branch
          %950 = sbr.rel (%p948) target = $region52
        $region51: #{tpu_custom_call.1} parent=31 // pred_region
          %s951 = smul.u32 16, %s26
          %953 = vsyncadd [#allocation6], 0
          %s954 = smul.addr %s951, 4
          %s955 = scalar_lea.hbm %s3, %s954
          %s956 = sshll.u32 [#allocation9], 4
          %s957 = int_to_ptr.vmem [resolvable:$true] %s956
          %s958 = sshll.u32 %s955, 4
          %s959 = int_to_ptr.hbm [resolvable:$true] %s958
          %964 = dma.vmem_to_hbm [thread:$0]  %s957, 1024, %s959, [#allocation6], 64, 64, 4
        $region52: #{tpu_custom_call.1} parent=31 // pred_fallthru
          _
        // Predicated region
        $region53: #{tpu_custom_call.1} parent=31 // pred_check
          %p965 = pneg %p127
        $region54: #{tpu_custom_call.1} parent=31 // pred_check_branch
          %967 = sbr.rel (%p965) target = $region56
        $region55: #{tpu_custom_call.1} parent=31 // pred_region
          %969 = dma.done [#allocation6], 1024
        $region56: #{tpu_custom_call.1} parent=31 // pred_fallthru
          _
      $region32: #{tpu_custom_call.1} parent=5 // pred_fallthru
        _
      %p970 = scmp.le.s32.totalorder 2, %s17
      // Predicated region
      $region57: #{tpu_custom_call.1} parent=5 // pred_check
        %p971 = pneg %p970
      $region58: #{tpu_custom_call.1} parent=5 // pred_check_branch
        %973 = sbr.rel (%p971) target = $region60
      $region59: #{tpu_custom_call.1} parent=5 // pred_region
        %s974 = ssub.s32 %s17, 2
      $region60: #{tpu_custom_call.1} parent=5 // pred_fallthru
        _
    $region6: #{tpu_custom_call.1} parent=1 // loop_footer
      %s21 = sadd.s32 1, %s17
    $region7: #{tpu_custom_call.1} parent=1 // loop_footer_branch
      %16 = sbr.rel target = $region3
    $region8: #{tpu_custom_call.1} parent=1 // loop_exit
      _
    %975 = vsyncpa [#allocation5], 1
    %s976 = scalar_lea.sflag [#allocation5], 1
    %977 = vsyncpa %s976, 1
    %978 = vsyncpa [#allocation8], 1
    %s979 = scalar_lea.sflag [#allocation8], 1
    %980 = vsyncpa %s979, 1
    %981 = vsyncpa [#allocation6], 1
    %s982 = scalar_lea.sflag [#allocation6], 1
    %983 = vsyncpa %s982, 1

</llo_original>
